<compile_context>
chip_gen: v7x
topology: tpu7x:2x2x1
jax: 0.10.0
libtpu: 0.0.40
codegen_flags: <defaults>
</compile_context>

<pallas_src>
import functools
import math

import jax
import jax.numpy as jnp
import numpy as np
from jax.experimental import pallas as pl
from jax.experimental.pallas import tpu as pltpu


def _round_up(x, m):
    return (x + m - 1) // m * m


def _pick_tr(H, W, target_tm, min_row_blocks=4):
    """Row-block height: multiple of the smallest step keeping (tr*W) % 8 == 0,
    sized so tm ~= target_tm, capped so each image has >= min_row_blocks blocks."""
    m = 8 // math.gcd(W, 8)                      # smallest tr step with tm % 8 == 0
    tr = max(1, target_tm // max(W, 1))
    tr = max(m, (tr // m) * m)                   # round down to a multiple of m
    cap = max(m, _round_up(-(-H // min_row_blocks), m))
    return min(tr, cap)


def _padded_block_bytes(shape, dtype):
    """Approximate Mosaic VMEM footprint of a block (lane pad to 128, sublane pad
    to the dtype's native tile)."""
    itemsize = jnp.dtype(dtype).itemsize
    lanes = _round_up(shape[-1], 128)
    subl_mult = 8 * max(1, 4 // itemsize)
    subl = _round_up(shape[-2], subl_mult) if len(shape) >= 2 else 1
    lead = 1
    for d in shape[:-2]:
        lead *= int(d)
    return lead * subl * lanes * itemsize


# ----------------------------- Pallas kernel ---------------------------------
def _conv_rows_kernel(x_ref, w_ref, b_ref, o_ref, *, tr, W, KH, KW):
    """Fused SAME conv (stride 1) + bias + ReLU for `tr` output rows of one image,
    computed as a single folded-K MXU dot.

    x_ref: (H_pad_tot, W_pad, Cin)   full padded image of this batch element
                                     (resident in VMEM across the r / n axes)
    w_ref: (KW*KH*Cin, tn)           folded weights (bf16, K order = (kj, ki, c))
    b_ref: (1, tn)                   bias (f32)
    o_ref: (tr*W, tn)                output rows, flattened (y, x) row-major
    """
    r = pl.program_id(1)
    row0 = r * tr

    # Build the (tr, W, KW*KH*Cin) im2col tile in VMEM: one second-minor (kj)
    # shift per kj (hoisted), cheap major-dim (ki) row slices inside.
    cols = []
    for kj in range(KW):                                          # static tap loops
        slab = x_ref[pl.ds(row0, tr + KH - 1), kj:kj + W, :]      # (tr+KH-1, W, Cin)
        for ki in range(KH):
            cols.append(slab[ki:ki + tr])                         # (tr, W, Cin)
    lhs = jnp.concatenate(cols, axis=-1)                          # (tr, W, K)
    lhs = lhs.reshape(tr * W, lhs.shape[-1])                      # (tm, K)

    # Single K-deep MXU dot; result stored exactly once (no f32 accumulator RMW).
    acc = jnp.dot(lhs, w_ref[...], preferred_element_type=jnp.float32)
    o_ref[...] = jnp.maximum(acc + b_ref[...], 0.0).astype(o_ref.dtype)


# ------------------------------- wrapper --------------------------------------
def visual_encoder_forward(images, weight, bias, *, target_tm=1024, tn_max=512,
                           compute_dtype=jnp.bfloat16, out_dtype=jnp.float32):
    """images: [B, Cin, H, W] (NCHW, like PyTorch).  Returns [B, H*W, Cout]."""
    B, Cin, H, W = images.shape
    Cout, Cin_w, KH, KW = weight.shape
    assert Cin == Cin_w
    # TODO(synk): only odd KH/KW reproduce PyTorch SAME-conv semantics exactly.
    pad_h, pad_w = KH // 2, KW // 2

    tr = _pick_tr(H, W, target_tm)
    H_out_pad = _round_up(H, tr)
    num_r = H_out_pad // tr
    tm = tr * W
    M_pad = H_out_pad * W

    W_pad = W + 2 * pad_w
    H_pad_tot = H_out_pad + 2 * pad_h

    # Lane-dense Cout; tn = largest 128-multiple divisor of Cout_pad <= tn_max.
    Cout_pad = _round_up(Cout, 128)
    tn = 128
    for cand in (tn_max, 384, 256, 128):
        cand = _round_up(min(cand, Cout_pad), 128)
        if Cout_pad % cand == 0:
            tn = cand
            break
    num_n = Cout_pad // tn
    K = KW * KH * Cin

    # Host-side glue: NCHW -> NHWC, spatial zero-pad, bf16 cast.  The image is
    # streamed into VMEM once per batch element (block index independent of r/n).
    x = jnp.transpose(images, (0, 2, 3, 1))                       # [B, H, W, Cin]
    x = jnp.pad(x, ((0, 0),
                    (pad_h, pad_h + (H_out_pad - H)),
                    (pad_w, pad_w),
                    (0, 0))).astype(compute_dtype)                # [B, H_pad_tot, W_pad, Cin]

    # Folded weights: K ordered (kj, ki, c) to match the kernel's concat order.
    w2d = jnp.transpose(weight, (3, 2, 1, 0)).reshape(K, Cout)
    w2d = jnp.pad(w2d, ((0, 0), (0, Cout_pad - Cout))).astype(compute_dtype)
    b2d = jnp.pad(bias, (0, Cout_pad - Cout)).reshape(1, Cout_pad).astype(jnp.float32)

    vmem_need = (
        2 * _padded_block_bytes((H_pad_tot, W_pad, Cin), compute_dtype)   # image x2
        + 2 * _padded_block_bytes((K, tn), compute_dtype)                 # weights x2
        + 2 * _padded_block_bytes((1, tn), jnp.float32)                   # bias x2
        + 2 * _padded_block_bytes((tm, tn), out_dtype)                    # out x2
        + _padded_block_bytes((tm, K), compute_dtype)                     # LHS temp
        + _padded_block_bytes((tm, tn), jnp.float32))                     # f32 dot result
    vmem_limit = min(max(32 * 1024 * 1024, int(vmem_need * 1.5)), 64 * 1024 * 1024)

    kernel = functools.partial(_conv_rows_kernel, tr=tr, W=W, KH=KH, KW=KW)

    out = pl.pallas_call(
        kernel,
        out_shape=jax.ShapeDtypeStruct((B, M_pad, Cout_pad), out_dtype),
        grid_spec=pltpu.PrefetchScalarGridSpec(
            num_scalar_prefetch=0,
            grid=(B, num_r, num_n),
            in_specs=[
                # Full padded image of batch element b; block index independent of
                # (r, n) -> resident in VMEM, one HBM read per image (fused im2col).
                pl.BlockSpec((None, H_pad_tot, W_pad, Cin),
                             lambda b, r, n: (b, 0, 0, 0)),
                # Folded weights / bias, tiled on N only.
                pl.BlockSpec((K, tn), lambda b, r, n: (0, n)),
                pl.BlockSpec((1, tn), lambda b, r, n: (0, n)),
            ],
            out_specs=pl.BlockSpec((None, tm, tn), lambda b, r, n: (b, r, n)),
        ),
        compiler_params=pltpu.CompilerParams(
            # Every grid step writes a disjoint output tile -> all axes parallel
            # (feeds both v7x TensorCores even at B == 1).
            dimension_semantics=("parallel", "parallel", "parallel"),
            vmem_limit_bytes=vmem_limit),
    )(x, w2d, b2d)

    if H_out_pad == H and Cout_pad == Cout:
        return out                      # no padding to strip (real backbone layers)
    # Drop row/channel padding; equivalent to vf.view(B, C, -1).transpose(-2, -1).
    return out[:, :H * W, :Cout]


# ------------------------------- reference -----------------------------------
def _im2col_nchw(x, kh, kw, pad_h, pad_w):
    B, C, H, W = x.shape
    xp = jnp.pad(x, ((0, 0), (0, 0), (pad_h, pad_h), (pad_w, pad_w)))
    patches = []
    for i in range(kh):
        for j in range(kw):
            patches.append(xp[:, :, i:i + H, j:j + W])            # (B, C, H, W)
    p = jnp.stack(patches, axis=2)                                 # (B, C, kh*kw, H, W)
    p = p.reshape(B, C * kh * kw, H, W)
    p = p.transpose(0, 2, 3, 1).reshape(B * H * W, C * kh * kw)    # rows = (b, y, x)
    return p


def visual_encoder_reference(images, weight, bias):
    B, Cin, H, W = images.shape
    Cout, _, KH, KW = weight.shape
    patches = _im2col_nchw(images, KH, KW, KH // 2, KW // 2)
    w2d = weight.reshape(Cout, -1).T
    vf = jnp.maximum(patches @ w2d + bias[None, :], 0.0)
    return vf.reshape(B, H * W, Cout)


def _run_case(key, B, Cin, H, W, Cout, KH, KW):
    k_img, k_w, k_b = jax.random.split(key, 3)
    images = jax.random.normal(k_img, (B, Cin, H, W), dtype=jnp.float32)
    weight = jax.random.normal(k_w, (Cout, Cin, KH, KW), dtype=jnp.float32) * 0.1
    bias = jax.random.normal(k_b, (Cout,), dtype=jnp.float32) * 0.1

    out = jax.block_until_ready(visual_encoder_forward(images, weight, bias))

    # Reference computed from the same bf16-rounded inputs (the kernel uses bf16
    # matmul inputs with f32 accumulation), so the comparison stays tight.
    ref = visual_encoder_reference(
        images.astype(jnp.bfloat16).astype(jnp.float32),
        weight.astype(jnp.bfloat16).astype(jnp.float32),
        bias)

    assert out.shape == (B, H * W, Cout), out.shape
    np.testing.assert_allclose(np.asarray(out), np.asarray(ref), rtol=5e-3, atol=5e-3)


if __name__ == "__main__":
    key = jax.random.PRNGKey(0)
    k0, k1 = jax.random.split(key)
    # Primary small case: multiple row-blocks, Cout padded to 128.
    _run_case(k0, B=2, Cin=4, H=16, W=16, Cout=32, KH=3, KW=3)
    # Odd spatial size: exercises output-row padding + tm % 8 handling.
    _run_case(k1, B=1, Cin=3, H=10, W=12, Cout=8, KH=3, KW=3)
    print("KERNEL_OK")
</pallas_src>

<mosaic_0001>
module attributes {stable_mosaic.version = 11 : i64} {
  func.func @_conv_rows_kernel(%arg0: i32, %arg1: i32, %arg2: i32, %arg3: memref<1x18x18x4xbf16, #tpu.memory_space<vmem>>, %arg4: memref<36x128xbf16, #tpu.memory_space<vmem>>, %arg5: memref<1x128xf32, #tpu.memory_space<vmem>>, %arg6: memref<1x64x128xf32, #tpu.memory_space<vmem>>) attributes {dimension_semantics = [#tpu.dimension_semantics<parallel>, #tpu.dimension_semantics<parallel>, #tpu.dimension_semantics<parallel>], iteration_bounds = array<i64: 2, 4, 1>, scalar_prefetch = 0 : i64, scratch_operands = 0 : i64, tpu.core_type = #tpu.core_type<tc>, window_params = [{transform_indices = @transform_0, window_bounds = array<i64: 1, 18, 18, 4>}, {transform_indices = @transform_1, window_bounds = array<i64: 36, 128>}, {transform_indices = @transform_2, window_bounds = array<i64: 1, 128>}, {transform_indices = @transform_3, window_bounds = array<i64: 1, 64, 128>}]} {
    %c4_i32 = arith.constant 4 : i32
    %0 = arith.muli %arg1, %c4_i32 : i32
    %c0 = arith.constant 0 : index
    %1 = arith.index_cast %0 : i32 to index
    %c0_0 = arith.constant 0 : index
    %c0_1 = arith.constant 0 : index
    %2 = vector.load %arg3[%c0, %1, %c0_0, %c0_1] : memref<1x18x18x4xbf16, #tpu.memory_space<vmem>>, vector<1x6x16x4xbf16>
    %3 = vector.shape_cast %2 : vector<1x6x16x4xbf16> to vector<6x16x4xbf16>
    %4 = vector.extract_strided_slice %3 {offsets = [0, 0, 0], sizes = [4, 16, 4], strides = [1, 1, 1]} : vector<6x16x4xbf16> to vector<4x16x4xbf16>
    %5 = vector.extract_strided_slice %3 {offsets = [1, 0, 0], sizes = [4, 16, 4], strides = [1, 1, 1]} : vector<6x16x4xbf16> to vector<4x16x4xbf16>
    %6 = vector.extract_strided_slice %3 {offsets = [2, 0, 0], sizes = [4, 16, 4], strides = [1, 1, 1]} : vector<6x16x4xbf16> to vector<4x16x4xbf16>
    %c0_2 = arith.constant 0 : index
    %7 = arith.index_cast %0 : i32 to index
    %c1 = arith.constant 1 : index
    %c0_3 = arith.constant 0 : index
    %8 = vector.load %arg3[%c0_2, %7, %c1, %c0_3] : memref<1x18x18x4xbf16, #tpu.memory_space<vmem>>, vector<1x6x16x4xbf16>
    %9 = vector.shape_cast %8 : vector<1x6x16x4xbf16> to vector<6x16x4xbf16>
    %10 = vector.extract_strided_slice %9 {offsets = [0, 0, 0], sizes = [4, 16, 4], strides = [1, 1, 1]} : vector<6x16x4xbf16> to vector<4x16x4xbf16>
    %11 = vector.extract_strided_slice %9 {offsets = [1, 0, 0], sizes = [4, 16, 4], strides = [1, 1, 1]} : vector<6x16x4xbf16> to vector<4x16x4xbf16>
    %12 = vector.extract_strided_slice %9 {offsets = [2, 0, 0], sizes = [4, 16, 4], strides = [1, 1, 1]} : vector<6x16x4xbf16> to vector<4x16x4xbf16>
    %c0_4 = arith.constant 0 : index
    %13 = arith.index_cast %0 : i32 to index
    %c2 = arith.constant 2 : index
    %c0_5 = arith.constant 0 : index
    %14 = vector.load %arg3[%c0_4, %13, %c2, %c0_5] : memref<1x18x18x4xbf16, #tpu.memory_space<vmem>>, vector<1x6x16x4xbf16>
    %15 = vector.shape_cast %14 : vector<1x6x16x4xbf16> to vector<6x16x4xbf16>
    %16 = vector.extract_strided_slice %15 {offsets = [0, 0, 0], sizes = [4, 16, 4], strides = [1, 1, 1]} : vector<6x16x4xbf16> to vector<4x16x4xbf16>
    %17 = vector.extract_strided_slice %15 {offsets = [1, 0, 0], sizes = [4, 16, 4], strides = [1, 1, 1]} : vector<6x16x4xbf16> to vector<4x16x4xbf16>
    %18 = vector.extract_strided_slice %15 {offsets = [2, 0, 0], sizes = [4, 16, 4], strides = [1, 1, 1]} : vector<6x16x4xbf16> to vector<4x16x4xbf16>
    %19 = tpu.concatenate %4, %5, %6, %10, %11, %12, %16, %17, %18 in 2 : vector<4x16x4xbf16>, vector<4x16x4xbf16>, vector<4x16x4xbf16>, vector<4x16x4xbf16>, vector<4x16x4xbf16>, vector<4x16x4xbf16>, vector<4x16x4xbf16>, vector<4x16x4xbf16>, vector<4x16x4xbf16> -> vector<4x16x36xbf16>
    %20 = vector.shape_cast %19 : vector<4x16x36xbf16> to vector<64x36xbf16>
    %c0_6 = arith.constant 0 : index
    %c0_7 = arith.constant 0 : index
    %21 = vector.load %arg4[%c0_6, %c0_7] : memref<36x128xbf16, #tpu.memory_space<vmem>>, vector<36x128xbf16>
    %cst = arith.constant dense<0.000000e+00> : vector<64x128xf32>
    %22 = tpu.matmul %20, %21, %cst {dimension_numbers = #tpu.dot_dimension_numbers<[1], [0], [0], [1], [0, 0, 1, 1], [], []>} : vector<64x36xbf16>, vector<36x128xbf16>, vector<64x128xf32> -> vector<64x128xf32>
    %c0_8 = arith.constant 0 : index
    %c0_9 = arith.constant 0 : index
    %23 = vector.load %arg5[%c0_8, %c0_9] : memref<1x128xf32, #tpu.memory_space<vmem>>, vector<1x128xf32>
    %24 = vector.broadcast %23 : vector<1x128xf32> to vector<64x128xf32>
    %25 = arith.addf %22, %24 : vector<64x128xf32>
    %cst_10 = arith.constant 0.000000e+00 : f32
    %26 = vector.broadcast %cst_10 : f32 to vector<64x128xf32>
    %27 = arith.maximumf %25, %26 : vector<64x128xf32>
    %c0_11 = arith.constant 0 : index
    %c0_12 = arith.constant 0 : index
    %c0_13 = arith.constant 0 : index
    %28 = vector.load %arg6[%c0_11, %c0_12, %c0_13] : memref<1x64x128xf32, #tpu.memory_space<vmem>>, vector<1x64x128xf32>
    %29 = vector.shape_cast %28 : vector<1x64x128xf32> to vector<64x128xf32>
    %30 = vector.shape_cast %27 : vector<64x128xf32> to vector<1x64x128xf32>
    tpu.vector_store %arg6[%c0_11, %c0_12, %c0_13], %30 {strides = array<i32>} : memref<1x64x128xf32, #tpu.memory_space<vmem>>, vector<1x64x128xf32>,
    return
  }
  func.func @transform_0(%arg0: i32, %arg1: i32, %arg2: i32) -> (i32, i32, i32, i32) {
    %c0_i32 = arith.constant 0 : i32
    %c0_i32_0 = arith.constant 0 : i32
    %c0_i32_1 = arith.constant 0 : i32
    %c0_i32_2 = arith.constant 0 : i32
    return %arg0, %c0_i32, %c0_i32_0, %c0_i32_1 : i32, i32, i32, i32
  }
  func.func @transform_1(%arg0: i32, %arg1: i32, %arg2: i32) -> (i32, i32) {
    %c0_i32 = arith.constant 0 : i32
    %c0_i32_0 = arith.constant 0 : i32
    return %c0_i32, %arg2 : i32, i32
  }
  func.func @transform_2(%arg0: i32, %arg1: i32, %arg2: i32) -> (i32, i32) {
    %c0_i32 = arith.constant 0 : i32
    %c0_i32_0 = arith.constant 0 : i32
    return %c0_i32, %arg2 : i32, i32
  }
  func.func @transform_3(%arg0: i32, %arg1: i32, %arg2: i32) -> (i32, i32, i32) {
    %c0_i32 = arith.constant 0 : i32
    return %arg0, %arg1, %arg2 : i32, i32, i32
  }
}

</mosaic_0001>

<llo_original>
// kernel: tpu_custom_call.1
$region0: #{tpu_custom_call.1}
  #allocation0 [shape = 'u32[]', space=smem, size = 0x4, offset = 0x4, fixed_abs, tag = 'smem constant byte address 0x4 - core index']
  #allocation1 [shape = 'u32[144,128]{1,0:T(1,128)}', space=vmem, size = 0x12000, scoped, tag = 'internal scratch']
  %s0 = inlined_call_operand.vmem [shape: bf16[2,18,18,4], index: 0, kind: input, shape index: {}]
  %s1 = inlined_call_operand.vmem [shape: bf16[36,128], index: 1, kind: input, shape index: {}]
  %s2 = inlined_call_operand.vmem [shape: f32[1,128], index: 2, kind: input, shape index: {}]
  %s3 = inlined_call_operand.hbm [shape: f32[2,256,128], index: 3, kind: output, shape index: {}]
  %s4 = sld [smem:[#allocation0]]
  $region45: #{tpu_custom_call.1} parent=0
    _
  %s6 = ssub.s32 1, %s4
  %s7 = scalar_select 0, %s6, %s4
  $region1: #{tpu_custom_call.1} parent=0
    #allocation2 [shape = 'u8[65536]{0}', space=vmem, size = 0x10000, scoped, tag = 'output window, operand 0']
    #allocation3 [shape = 's32[2]{0}', space=sflag, size = 0x8, scoped, tag = 'scoped memory for tpu_custom_call.1']
    %8 = vsyncpa [#allocation3], 0
    %s9 = scalar_lea.sflag [#allocation3], 1
    %10 = vsyncpa %s9, 0
    loop: start=0, step=1, limit=10
    $region2: #{tpu_custom_call.1} parent=1 // loop_pre_header
      _
    $region3: #{tpu_custom_call.1} parent=1 // loop_header
      %s12 = sphi 0, %s16
      %p13 = scmp.ge.s32.totalorder %s12, 10
      %s19 = sphi 0, %s38
      %s20 = sphi 0, %s34
      %s21 = sphi 0, %s30
      %s22 = sphi 0, %s19
      %s23 = sphi 0, %s20
      %s24 = sphi 0, %s21
      %s25 = sphi 0, %s22
      %s26 = sphi 0, %s23
      %s27 = sphi 0, %s24
      %s41 = sphi 0, %s43
      %s44 = sphi 0, %s41
      %s45 = sphi 0, %s44
      %s61 = sphi 0, %s45
      %s67 = sphi 0, %s69
      %s70 = sphi 0, %s67
      %s71 = sphi 0, %s70
      %s87 = sphi 0, %s71
      %s93 = sphi 0, %s95
      %s96 = sphi 0, %s93
      %s97 = sphi 0, %s96
      %s113 = sphi 0, %s97
      %s123 = sphi 0, %s125
      %s126 = sphi 0, %s123
      %s127 = sphi 0, %s126
      %s143 = sphi 0, %s127
    $region4: #{tpu_custom_call.1} parent=1 // loop_header_branch
      %15 = sbr.rel (%p13) target = $region8
    $region5: #{tpu_custom_call.1} parent=1 // loop_body
      %s17 = ssub.s32 %s12, 1
      %s18 = ssub.s32 %s12, 2
      %s28 = sadd.s32 1, %s21
      %p29 = scmp.ge.s32.totalorder %s28, 1
      %s30 = scalar_select %p29, 0, %s28
      %s31 = sadd.s32 1, %s20
      %s32 = scalar_select %p29, %s31, %s20
      %p33 = scmp.ge.s32.totalorder %s32, 4
      %s34 = scalar_select %p33, 0, %s32
      %s35 = sadd.s32 1, %s19
      %s36 = scalar_select %p33, %s35, %s19
      %p37 = scmp.ge.s32.totalorder %s36, 2
      %s38 = scalar_select %p37, 0, %s36
      %s39 = ssub.s32 %s19, %s38
      %p40 = scmp.eq.s32.totalorder %s39, 0
      %s42 = sadd.s32 %s41, 1
      %s43 = scalar_select %p40, %s41, %s42
      %p46 = pneg %p40
      %p47 = scmp.eq.s32.totalorder %s12, 7
      %p48 = por %p46, %p47
      %p49 = scmp.ne.s32.totalorder %s41, %s44
      %p50 = scmp.eq.s32.totalorder %s12, 0
      %p51 = por %p49, %p50
      %p52 = scmp.ne.s32.totalorder %s41, %s44
      %p53 = scmp.eq.s32.totalorder %s17, 7
      %p54 = por %p52, %p53
      %p55 = scmp.ne.s32.totalorder %s44, %s45
      %p56 = scmp.eq.s32.totalorder %s17, 0
      %p57 = por %p55, %p56
      %p58 = scmp.ne.s32.totalorder %s44, %s45
      %p59 = scmp.eq.s32.totalorder %s18, 7
      %p60 = por %p58, %p59
      %p62 = scmp.ne.s32.totalorder %s45, %s61
      %p63 = scmp.eq.s32.totalorder %s18, 0
      %p64 = por %p62, %p63
      %s65 = ssub.s32 %s21, %s30
      %p66 = scmp.eq.s32.totalorder %s65, 0
      %s68 = sadd.s32 %s67, 1
      %s69 = scalar_select %p66, %s67, %s68
      %p72 = pneg %p66
      %p73 = scmp.eq.s32.totalorder %s12, 7
      %p74 = por %p72, %p73
      %p75 = scmp.ne.s32.totalorder %s67, %s70
      %p76 = scmp.eq.s32.totalorder %s12, 0
      %p77 = por %p75, %p76
      %p78 = scmp.ne.s32.totalorder %s67, %s70
      %p79 = scmp.eq.s32.totalorder %s17, 7
      %p80 = por %p78, %p79
      %p81 = scmp.ne.s32.totalorder %s70, %s71
      %p82 = scmp.eq.s32.totalorder %s17, 0
      %p83 = por %p81, %p82
      %p84 = scmp.ne.s32.totalorder %s70, %s71
      %p85 = scmp.eq.s32.totalorder %s18, 7
      %p86 = por %p84, %p85
      %p88 = scmp.ne.s32.totalorder %s71, %s87
      %p89 = scmp.eq.s32.totalorder %s18, 0
      %p90 = por %p88, %p89
      %s91 = ssub.s32 %s21, %s30
      %p92 = scmp.eq.s32.totalorder %s91, 0
      %s94 = sadd.s32 %s93, 1
      %s95 = scalar_select %p92, %s93, %s94
      %p98 = pneg %p92
      %p99 = scmp.eq.s32.totalorder %s12, 7
      %p100 = por %p98, %p99
      %p101 = scmp.ne.s32.totalorder %s93, %s96
      %p102 = scmp.eq.s32.totalorder %s12, 0
      %p103 = por %p101, %p102
      %p104 = scmp.ne.s32.totalorder %s93, %s96
      %p105 = scmp.eq.s32.totalorder %s17, 7
      %p106 = por %p104, %p105
      %p107 = scmp.ne.s32.totalorder %s96, %s97
      %p108 = scmp.eq.s32.totalorder %s17, 0
      %p109 = por %p107, %p108
      %p110 = scmp.ne.s32.totalorder %s96, %s97
      %p111 = scmp.eq.s32.totalorder %s18, 7
      %p112 = por %p110, %p111
      %p114 = scmp.ne.s32.totalorder %s97, %s113
      %p115 = scmp.eq.s32.totalorder %s18, 0
      %p116 = por %p114, %p115
      %s117 = ssub.s32 %s19, %s38
      %s118 = ssub.s32 %s20, %s34
      %s119 = sor.u32 %s117, %s118
      %s120 = ssub.s32 %s21, %s30
      %s121 = sor.u32 %s119, %s120
      %p122 = scmp.eq.s32.totalorder %s121, 0
      %s124 = sadd.s32 %s123, 1
      %s125 = scalar_select %p122, %s123, %s124
      %p128 = pneg %p122
      %p129 = scmp.eq.s32.totalorder %s12, 7
      %p130 = por %p128, %p129
      %p131 = scmp.ne.s32.totalorder %s123, %s126
      %p132 = scmp.eq.s32.totalorder %s12, 0
      %p133 = por %p131, %p132
      %p134 = scmp.ne.s32.totalorder %s123, %s126
      %p135 = scmp.eq.s32.totalorder %s17, 7
      %p136 = por %p134, %p135
      %p137 = scmp.ne.s32.totalorder %s126, %s127
      %p138 = scmp.eq.s32.totalorder %s17, 0
      %p139 = por %p137, %p138
      %p140 = scmp.ne.s32.totalorder %s126, %s127
      %p141 = scmp.eq.s32.totalorder %s18, 7
      %p142 = por %p140, %p141
      %p144 = scmp.ne.s32.totalorder %s127, %s143
      %p145 = scmp.eq.s32.totalorder %s18, 0
      %p146 = por %p144, %p145
      %p147 = scmp.le.s32.totalorder 1, %s12
      %p148 = scmp.lt.s32.totalorder %s12, 9
      %p149 = pnand %p147, %p148
      %p150 = pneg %p149
      // Predicated region
      $region9: #{tpu_custom_call.1} parent=5 // pred_check
        _
      $region10: #{tpu_custom_call.1} parent=5 // pred_check_branch
        %152 = sbr.rel (%p149) target = $region12
      $region11: #{tpu_custom_call.1} parent=5 // pred_region
        %s153 = ssub.s32 %s12, 1
        // Predicated region
        $region13: #{tpu_custom_call.1} parent=11 // pred_check
          %p154 = pneg %p83
        $region14: #{tpu_custom_call.1} parent=11 // pred_check_branch
          %156 = sbr.rel (%p154) target = $region16
        $region15: #{tpu_custom_call.1} parent=11 // pred_region
          %p157 = scmp.lt.s32.totalorder %s24, 0
          %s158 = scalar_select %p157, %s24, 0
          %s159 = smul.addr %s158, 4
          %s160 = scalar_lea.vmem %s1, %s159
        $region16: #{tpu_custom_call.1} parent=11 // pred_fallthru
          _
        // Predicated region
        $region17: #{tpu_custom_call.1} parent=11 // pred_check
          %p161 = pneg %p109
        $region18: #{tpu_custom_call.1} parent=11 // pred_check_branch
          %163 = sbr.rel (%p161) target = $region20
        $region19: #{tpu_custom_call.1} parent=11 // pred_region
          %p164 = scmp.lt.s32.totalorder %s24, 0
          %s165 = scalar_select %p164, %s24, 0
          %s166 = scalar_lea.vmem %s2, %s165
        $region20: #{tpu_custom_call.1} parent=11 // pred_fallthru
          _
      $region12: #{tpu_custom_call.1} parent=5 // pred_fallthru
        _
      %p167 = scmp.lt.s32.totalorder %s12, 8
      // Predicated region
      $region21: #{tpu_custom_call.1} parent=5 // pred_check
        %p168 = pneg %p167
      $region22: #{tpu_custom_call.1} parent=5 // pred_check_branch
        %170 = sbr.rel (%p168) target = $region24
      $region23: #{tpu_custom_call.1} parent=5 // pred_region
        // Predicated region
        $region25: #{tpu_custom_call.1} parent=23 // pred_check
          %p171 = pneg %p51
        $region26: #{tpu_custom_call.1} parent=23 // pred_check_branch
          %173 = sbr.rel (%p171) target = $region28
        $region27: #{tpu_custom_call.1} parent=23 // pred_region
          %p174 = scmp.lt.s32.totalorder %s19, 1
          %s175 = scalar_select %p174, %s19, 1
          %s176 = smul.addr %s175, 54
          %s177 = smul.addr %s176, 4
          %s178 = scalar_lea.vmem %s0, %s177
        $region28: #{tpu_custom_call.1} parent=23 // pred_fallthru
          _
      $region24: #{tpu_custom_call.1} parent=5 // pred_fallthru
        _
      %p179 = scmp.le.s32.totalorder 1, %s12
      %p180 = scmp.lt.s32.totalorder %s12, 9
      %p181 = pnand %p179, %p180
      %p182 = pneg %p181
      // Predicated region
      $region29: #{tpu_custom_call.1} parent=5 // pred_check
        _
      $region30: #{tpu_custom_call.1} parent=5 // pred_check_branch
        %184 = sbr.rel (%p181) target = $region32
      $region31: #{tpu_custom_call.1} parent=5 // pred_region
        %s185 = ssub.s32 %s12, 1
        %p186 = scmp.lt.s32.totalorder %s22, 1
        %s187 = scalar_select %p186, %s22, 1
        %s188 = smul.addr %s187, 54
        %s189 = smul.addr %s188, 4
        %s190 = scalar_lea.vmem %s0, %s189
        %p191 = pneg %p57
        %p192 = pneg %p54
        %p193 = scmp.lt.s32.totalorder %s24, 0
        %s194 = scalar_select %p193, %s24, 0
        %s195 = smul.addr %s194, 4
        %s196 = scalar_lea.vmem %s1, %s195
        %p197 = pneg %p83
        %p198 = pneg %p80
        %p199 = scmp.lt.s32.totalorder %s24, 0
        %s200 = scalar_select %p199, %s24, 0
        %s201 = scalar_lea.vmem %s2, %s200
        %p202 = pneg %p109
        %p203 = pneg %p106
        %p204 = pneg %p139
        %p205 = pneg %p136
        %s206 = sand.u32 %s126, 1
        %s207 = scalar_lea.sflag [#allocation3], %s206
        %s208 = sand.u32 %s126, 1
        %s209 = smul.addr %s208, 64
        %s210 = scalar_lea.vmem [#allocation2], %s209
        %p211 = scmp.lt.s32.totalorder %s22, 1
        %s212 = scalar_select %p211, %s22, 1
        %s213 = smul.addr %s212, 54
        %s214 = smul.addr %s213, 4
        %s215 = scalar_lea.vmem %s0, %s214
        %p216 = scmp.lt.s32.totalorder %s24, 0
        %s217 = scalar_select %p216, %s24, 0
        %s218 = smul.addr %s217, 4
        %s219 = scalar_lea.vmem %s1, %s218
        %p220 = scmp.lt.s32.totalorder %s24, 0
        %s221 = scalar_select %p220, %s24, 0
        %s222 = scalar_lea.vmem %s2, %s221
        %s223 = smul.u32 8, %s23
        %s225 = smul.u32 %s23, 4
        %s226 = smul.u32 %s225, 3
        %s227 = smul.addr %s226, 4
        %s228 = scalar_lea.vmem %s215, %s227
        %v229 = vld [vmem:[%s228] sm:$0xf]
        %v230 = vld [vmem:[%s228 + $0x4] sm:$0xf]
        %v231 = vld [vmem:[%s228 + $0xc] sm:$0xf]
        %v232 = vld [vmem:[%s228 + $0x10] sm:$0xf]
        %v233 = vld [vmem:[%s228 + $0x18] sm:$0xf]
        %v234 = vld [vmem:[%s228 + $0x1c] sm:$0xf]
        %v235 = vld [vmem:[%s228 + $0x24] sm:$0xf]
        %v236 = vld [vmem:[%s228 + $0x28] sm:$0xf]
        %v237 = vld [vmem:[%s228 + $0x30] sm:$0xf]
        %v238 = vld [vmem:[%s228 + $0x34] sm:$0xf]
        %v239 = vld [vmem:[%s228 + $0x3c] sm:$0xf]
        %v240 = vld [vmem:[%s228 + $0x40] sm:$0xf]
        %v241 = vld [vmem:[%s228 + $0x8] sm:$0x1]
        %v242 = vld [vmem:[%s228 + $0x14] sm:$0x1]
        %v243 = vld [vmem:[%s228 + $0x20] sm:$0x1]
        %v244 = vld [vmem:[%s228 + $0x2c] sm:$0x1]
        %v245 = vld [vmem:[%s228 + $0x38] sm:$0x1]
        %v246 = vld [vmem:[%s228 + $0x44] sm:$0x1]
        %v247 = vld [vmem:[%s228] sm:$0xe]
        %v248 = vld [vmem:[%s228 + $0xc] sm:$0xe]
        %v249 = vld [vmem:[%s228 + $0x18] sm:$0xe]
        %v250 = vld [vmem:[%s228 + $0x24] sm:$0xe]
        %v251 = vld [vmem:[%s228 + $0x30] sm:$0xe]
        %v252 = vld [vmem:[%s228 + $0x3c] sm:$0xe]
        %v261 = vunpack.c.l.b16 %v229
        %v262 = vunpack.c.l.b16 %v230
        %v263 = vunpack.c.l.b16 %v231
        %v264 = vunpack.c.l.b16 %v232
        %v265 = vunpack.c.l.b16 %v233
        %v266 = vunpack.c.l.b16 %v234
        %v267 = vunpack.c.l.b16 %v235
        %v268 = vunpack.c.l.b16 %v236
        %v269 = vpack.c.b16 %v262, %v261
        %v270 = vpack.c.b16 %v264, %v263
        %v271 = vpack.c.b16 %v266, %v265
        %v272 = vpack.c.b16 %v268, %v267
        %v275 = vunpack.c.l.b16 %v237
        %v276 = vunpack.c.l.b16 %v238
        %v277 = vpack.c.b16 %v276, %v275
        %278 = vrot.lane.b32.xlu0 %v270, 4
        %v279 = vpop.permute.xlu0 %278
        %280 = vrot.lane.b32.xlu0 %v271, 4
        %v281 = vpop.permute.xlu0 %280
        %282 = vrot.lane.b32.xlu0 %v272, 4
        %v283 = vpop.permute.xlu0 %282
        %284 = vrot.lane.b32.xlu0 %v277, 4
        %v285 = vpop.permute.xlu0 %284
        %v288 = vunpack.c.l.b16 %v239
        %v289 = vunpack.c.l.b16 %v240
        %v290 = vpack.c.b16 %v289, %v288
        %291 = vrot.lane.b32.xlu0 %v271, 8
        %v292 = vpop.permute.xlu0 %291
        %293 = vrot.lane.b32.xlu0 %v272, 8
        %v294 = vpop.permute.xlu0 %293
        %295 = vrot.lane.b32.xlu0 %v277, 8
        %v296 = vpop.permute.xlu0 %295
        %297 = vrot.lane.b32.xlu0 %v290, 8
        %v298 = vpop.permute.xlu0 %297
        %v303 = vunpack.c.l.b16 %v241
        %v304 = vunpack.c.l.b16 %v242
        %v305 = vunpack.c.l.b16 %v243
        %v306 = vunpack.c.l.b16 %v244
        %v307 = vpack.c.b16 %v303, %v303
        %v308 = vpack.c.b16 %v304, %v304
        %v309 = vpack.c.b16 %v305, %v305
        %v310 = vpack.c.b16 %v306, %v306
        %vm311 = vsmask.f32 7424
        %v313 = vshrl.u32 %v269, 16
        %v315 = vshll.u32 %v269, 16
        %v317 = vrot.slane %v315, 1
        %v318 = vor.u32 %v313, %v317
        %v320 = vshll.u32 %v307, 16
        %v322 = vrot.slane %v320, 1
        %v323 = vsel %vm311, %v318, %v322
        %v325 = vshrl.u32 %v270, 16
        %v327 = vshll.u32 %v270, 16
        %v329 = vrot.slane %v327, 1
        %v330 = vor.u32 %v325, %v329
        %v332 = vshll.u32 %v308, 16
        %v334 = vrot.slane %v332, 1
        %v335 = vsel %vm311, %v330, %v334
        %v337 = vshrl.u32 %v271, 16
        %v339 = vshll.u32 %v271, 16
        %v341 = vrot.slane %v339, 1
        %v342 = vor.u32 %v337, %v341
        %v344 = vshll.u32 %v309, 16
        %v346 = vrot.slane %v344, 1
        %v347 = vsel %vm311, %v342, %v346
        %v349 = vshrl.u32 %v272, 16
        %v351 = vshll.u32 %v272, 16
        %v353 = vrot.slane %v351, 1
        %v354 = vor.u32 %v349, %v353
        %v356 = vshll.u32 %v310, 16
        %v358 = vrot.slane %v356, 1
        %v359 = vsel %vm311, %v354, %v358
        %360 = vrot.lane.b32.xlu0 %v323, 12
        %v361 = vpop.permute.xlu0 %360
        %362 = vrot.lane.b32.xlu0 %v335, 12
        %v363 = vpop.permute.xlu0 %362
        %364 = vrot.lane.b32.xlu0 %v347, 12
        %v365 = vpop.permute.xlu0 %364
        %366 = vrot.lane.b32.xlu0 %v359, 12
        %v367 = vpop.permute.xlu0 %366
        %v369 = vunpack.c.l.b16 %v245
        %v370 = vpack.c.b16 %v369, %v369
        %v372 = vshrl.u32 %v277, 16
        %v374 = vshll.u32 %v277, 16
        %v376 = vrot.slane %v374, 1
        %v377 = vor.u32 %v372, %v376
        %v379 = vshll.u32 %v370, 16
        %v381 = vrot.slane %v379, 1
        %v382 = vsel %vm311, %v377, %v381
        %383 = vrot.lane.b32.xlu0 %v335, 16
        %v384 = vpop.permute.xlu0 %383
        %385 = vrot.lane.b32.xlu0 %v347, 16
        %v386 = vpop.permute.xlu0 %385
        %387 = vrot.lane.b32.xlu0 %v359, 16
        %v388 = vpop.permute.xlu0 %387
        %389 = vrot.lane.b32.xlu0 %v382, 16
        %v390 = vpop.permute.xlu0 %389
        %v392 = vunpack.c.l.b16 %v246
        %v393 = vpack.c.b16 %v392, %v392
        %v395 = vshrl.u32 %v290, 16
        %v397 = vshll.u32 %v290, 16
        %v399 = vrot.slane %v397, 1
        %v400 = vor.u32 %v395, %v399
        %v402 = vshll.u32 %v393, 16
        %v404 = vrot.slane %v402, 1
        %v405 = vsel %vm311, %v400, %v404
        %406 = vrot.lane.b32.xlu0 %v347, 20
        %v407 = vpop.permute.xlu0 %406
        %408 = vrot.lane.b32.xlu0 %v359, 20
        %v409 = vpop.permute.xlu0 %408
        %410 = vrot.lane.b32.xlu0 %v382, 20
        %v411 = vpop.permute.xlu0 %410
        %412 = vrot.lane.b32.xlu0 %v405, 20
        %v413 = vpop.permute.xlu0 %412
        %v418 = vunpack.c.l.b16 %v247
        %v419 = vunpack.c.l.b16 %v248
        %v420 = vunpack.c.l.b16 %v249
        %v421 = vunpack.c.l.b16 %v250
        %v422 = vpack.c.b16 %v262, %v418
        %v423 = vpack.c.b16 %v264, %v419
        %v424 = vpack.c.b16 %v266, %v420
        %v425 = vpack.c.b16 %v268, %v421
        %vm426 = vcmask 1046528
        %v427 = vrot.slane %v422, 1
        %v428 = vrot.slane %v307, 1
        %v429 = vsel %vm426, %v427, %v428
        %v430 = vrot.slane %v423, 1
        %v431 = vrot.slane %v308, 1
        %v432 = vsel %vm426, %v430, %v431
        %v433 = vrot.slane %v424, 1
        %v434 = vrot.slane %v309, 1
        %v435 = vsel %vm426, %v433, %v434
        %v436 = vrot.slane %v425, 1
        %v437 = vrot.slane %v310, 1
        %v438 = vsel %vm426, %v436, %v437
        %439 = vrot.lane.b32.xlu0 %v429, 24
        %v440 = vpop.permute.xlu0 %439
        %441 = vrot.lane.b32.xlu0 %v432, 24
        %v442 = vpop.permute.xlu0 %441
        %443 = vrot.lane.b32.xlu0 %v435, 24
        %v444 = vpop.permute.xlu0 %443
        %445 = vrot.lane.b32.xlu0 %v438, 24
        %v446 = vpop.permute.xlu0 %445
        %v448 = vunpack.c.l.b16 %v251
        %v449 = vpack.c.b16 %v276, %v448
        %v450 = vrot.slane %v449, 1
        %v451 = vrot.slane %v370, 1
        %v452 = vsel %vm426, %v450, %v451
        %453 = vrot.lane.b32.xlu0 %v432, 28
        %v454 = vpop.permute.xlu0 %453
        %455 = vrot.lane.b32.xlu0 %v435, 28
        %v456 = vpop.permute.xlu0 %455
        %457 = vrot.lane.b32.xlu0 %v438, 28
        %v458 = vpop.permute.xlu0 %457
        %459 = vrot.lane.b32.xlu0 %v452, 28
        %v460 = vpop.permute.xlu0 %459
        %v462 = vunpack.c.l.b16 %v252
        %v463 = vpack.c.b16 %v289, %v462
        %v464 = vrot.slane %v463, 1
        %v465 = vrot.slane %v393, 1
        %v466 = vsel %vm426, %v464, %v465
        %467 = vrot.lane.b32.xlu0 %v435, 32
        %v468 = vpop.permute.xlu0 %467
        %469 = vrot.lane.b32.xlu0 %v438, 32
        %v470 = vpop.permute.xlu0 %469
        %471 = vrot.lane.b32.xlu0 %v452, 32
        %v472 = vpop.permute.xlu0 %471
        %473 = vrot.lane.b32.xlu0 %v466, 32
        %v474 = vpop.permute.xlu0 %473
        %vm475 = vcmask 31744
        %v477 = vsel %vm475, %v269, %v279
        %v479 = vsel %vm475, %v270, %v281
        %v481 = vsel %vm475, %v271, %v283
        %v483 = vsel %vm475, %v272, %v285
        %vm484 = vcmask 64512
        %v486 = vsel %vm484, %v477, %v292
        %v488 = vsel %vm484, %v479, %v294
        %v490 = vsel %vm484, %v481, %v296
        %v492 = vsel %vm484, %v483, %v298
        %vm493 = vcmask 97280
        %v495 = vsel %vm493, %v486, %v361
        %v497 = vsel %vm493, %v488, %v363
        %v499 = vsel %vm493, %v490, %v365
        %v501 = vsel %vm493, %v492, %v367
        %vm502 = vcmask 130048
        %v504 = vsel %vm502, %v495, %v384
        %v506 = vsel %vm502, %v497, %v386
        %v508 = vsel %vm502, %v499, %v388
        %v510 = vsel %vm502, %v501, %v390
        %vm511 = vcmask 162816
        %v513 = vsel %vm511, %v504, %v407
        %v515 = vsel %vm511, %v506, %v409
        %v517 = vsel %vm511, %v508, %v411
        %v519 = vsel %vm511, %v510, %v413
        %vm520 = vcmask 195584
        %v522 = vsel %vm520, %v513, %v440
        %v524 = vsel %vm520, %v515, %v442
        %v526 = vsel %vm520, %v517, %v444
        %v528 = vsel %vm520, %v519, %v446
        %vm529 = vcmask 228352
        %v531 = vsel %vm529, %v522, %v454
        %v533 = vsel %vm529, %v524, %v456
        %v535 = vsel %vm529, %v526, %v458
        %v537 = vsel %vm529, %v528, %v460
        %vm538 = vcmask 261120
        %v540 = vsel %vm538, %v531, %v468
        %v542 = vsel %vm538, %v533, %v470
        %v544 = vsel %vm538, %v535, %v472
        %v546 = vsel %vm538, %v537, %v474
        %v547 = vld [vmem:[%s219] sm:$0xf]
        %v548 = vld [vmem:[%s219 + $0x4] sm:$0xf]
        %v549 = vld [vmem:[%s219 + $0x8] sm:$0xf]
        %v550 = vld [vmem:[%s219 + $0xc] sm:$0xf]
        %v551 = vld [vmem:[%s219 + $0x10] sm:$0x3]
        %v552 = vld [vmem:[%s222] sm:$0x1]
        %v554 = vlaneseq
        %v555 = vshrl.u32 %v554, 7
        %v556 = vsub.s32 0, %v555
        %v557 = vrot.slane %v552, %v556
        %v564 = vunpack.c.l.b16 %v547
        %v565 = vunpack.c.l.b16 %v548
        %v566 = vunpack.c.l.b16 %v549
        %v567 = vunpack.c.l.b16 %v550
        %v568 = vunpack.c.l.b16 %v551
        %v569 = vpack.c.b16 %v565, %v564
        %v570 = vpack.c.b16 %v567, %v566
        %v571 = vpack.c.b16 %v568, %v568
        %vm574 = vcmask 293888
        %v575 = vsel %vm574, %v540, 0
        %v577 = vsel %vm574, %v542, 0
        %v579 = vsel %vm574, %v544, 0
        %v581 = vsel %vm574, %v546, 0
        %vm583 = vcmask 1041408
        %v585 = vsel %vm583, %v571, 0
        %587 = vmatprep.subr.bf16.mxu0 0
        %588 = vmatpush1.bf16.msra.mxu0 %v569
        %589 = vmatprep.subr.bf16.mxu0 0
        %590 = vmatpush1.bf16.msra.mxu0 %v570
        %591 = vmatprep.subr.bf16.mxu0 0
        %592 = vmatpush1.bf16.msra.mxu0 %v585
        %593 = vmatprep.subr.bf16.mxu0 0
        %594 = vmatpush1.bf16.msra.mxu0 0
        %595 = vmatprep.subr.bf16.mxu0 0
        %596 = vmatpush1.bf16.msra.mxu0 0
        %597 = vmatprep.subr.bf16.mxu0 0
        %598 = vmatpush1.bf16.msra.mxu0 0
        %599 = vmatprep.subr.bf16.mxu0 0
        %600 = vmatpush1.bf16.msra.mxu0 0
        %601 = vmatprep.subr.bf16.mxu0 0
        %602 = vmatpush1.bf16.msra.mxu0 0
        %603 = vmatprep.subr.bf16.mxu0 0
        %604 = vmatpush1.bf16.msra.mxu0 0
        %605 = vmatprep.subr.bf16.mxu0 0
        %606 = vmatpush1.bf16.msra.mxu0 0
        %607 = vmatprep.subr.bf16.mxu0 0
        %608 = vmatpush1.bf16.msra.mxu0 0
        %609 = vmatprep.subr.bf16.mxu0 0
        %610 = vmatpush1.bf16.msra.mxu0 0
        %611 = vmatprep.subr.bf16.mxu0 0
        %612 = vmatpush1.bf16.msra.mxu0 0
        %613 = vmatprep.subr.bf16.mxu0 0
        %614 = vmatpush1.bf16.msra.mxu0 0
        %615 = vmatprep.subr.bf16.mxu0 0
        %616 = vmatpush1.bf16.msra.mxu0 0
        %617 = vmatprep.subr.bf16.mxu0 0
        %618 = vmatpush1.bf16.msra.mxu0 0
        %619 = vmatprep.mubr.bf16.mxu0 0
        %620 = vmatmul.mubr.bf16.gmra.mrb[0].mxu0 %v575
        %v621 = vpop.f32.mrb[0].mxu0
        %v622 = vadd.f32 %v557, %v621
        %v623 = vpop.f32.mrb[0].mxu0
        %v624 = vpop.f32.mrb[0].mxu0
        %v625 = vadd.f32 %v557, %v624
        %v626 = vpop.f32.mrb[0].mxu0
        %627 = vmatprep.mubr.bf16.mxu0 0
        %628 = vmatmul.mubr.bf16.gmra.mrb[0].mxu0 %v577
        %v629 = vpop.f32.mrb[0].mxu0
        %v630 = vadd.f32 %v557, %v629
        %v631 = vpop.f32.mrb[0].mxu0
        %v632 = vpop.f32.mrb[0].mxu0
        %v633 = vadd.f32 %v557, %v632
        %v634 = vpop.f32.mrb[0].mxu0
        %635 = vmatprep.mubr.bf16.mxu0 0
        %636 = vmatmul.mubr.bf16.gmra.mrb[0].mxu0 %v579
        %v637 = vpop.f32.mrb[0].mxu0
        %v638 = vadd.f32 %v557, %v637
        %v639 = vpop.f32.mrb[0].mxu0
        %v640 = vpop.f32.mrb[0].mxu0
        %v641 = vadd.f32 %v557, %v640
        %v642 = vpop.f32.mrb[0].mxu0
        %643 = vmatprep.mubr.bf16.mxu0 0
        %644 = vmatmul.mubr.bf16.gmra.mrb[0].mxu0 %v581
        %v645 = vpop.f32.mrb[0].mxu0
        %v646 = vadd.f32 %v557, %v645
        %v647 = vpop.f32.mrb[0].mxu0
        %v648 = vpop.f32.mrb[0].mxu0
        %v649 = vadd.f32 %v557, %v648
        %v650 = vpop.f32.mrb[0].mxu0
        %651 = vdwg.mxu0
        %v652 = vmax.f32 %v622, 0.0
        %v653 = vmax.f32 %v625, 0.0
        %v654 = vmax.f32 %v630, 0.0
        %v655 = vmax.f32 %v633, 0.0
        %v656 = vmax.f32 %v638, 0.0
        %v657 = vmax.f32 %v641, 0.0
        %v658 = vmax.f32 %v646, 0.0
        %v659 = vmax.f32 %v649, 0.0
        %660 = vst [vmem:[%s210] sm:$0xff] %v652
        %661 = vst [vmem:[%s210 + $0x8] sm:$0xff] %v653
        %662 = vst [vmem:[%s210 + $0x10] sm:$0xff] %v654
        %663 = vst [vmem:[%s210 + $0x18] sm:$0xff] %v655
        %664 = vst [vmem:[%s210 + $0x20] sm:$0xff] %v656
        %665 = vst [vmem:[%s210 + $0x28] sm:$0xff] %v657
        %666 = vst [vmem:[%s210 + $0x30] sm:$0xff] %v658
        %667 = vst [vmem:[%s210 + $0x38] sm:$0xff] %v659
        %s668 = sand.u32 %s126, 1
        %s669 = scalar_lea.sflag [#allocation3], %s668
        %s670 = sand.u32 %s126, 1
        %s671 = smul.addr %s670, 64
        %s672 = scalar_lea.vmem [#allocation2], %s671
        // Predicated region
        $region33: #{tpu_custom_call.1} parent=31 // pred_check
          %p673 = pneg %p136
        $region34: #{tpu_custom_call.1} parent=31 // pred_check_branch
          %675 = sbr.rel (%p673) target = $region36
        $region35: #{tpu_custom_call.1} parent=31 // pred_region
          %s676 = smul.u32 8, %s23
          %s678 = ssub.s32 1024, 1024
          %679 = vsyncadd %s669, %s678
          %s680 = sadd.s32 %s24, %s676
          %s681 = smul.addr %s22, 32
          %s682 = sadd.s32 %s680, %s681
          %s683 = smul.addr %s682, 128
          %s684 = scalar_lea.hbm %s3, %s683
          %s685 = sshll.u32 %s672, 4
          %s686 = int_to_ptr.vmem [resolvable:$true] %s685
          %691 = dma.vmem_to_hbm [thread:$0]  %s686, 1024, %s684, %s669, 128, 128, 8
        $region36: #{tpu_custom_call.1} parent=31 // pred_fallthru
          _
      $region32: #{tpu_custom_call.1} parent=5 // pred_fallthru
        _
      %p692 = scmp.le.s32.totalorder 2, %s12
      // Predicated region
      $region37: #{tpu_custom_call.1} parent=5 // pred_check
        %p693 = pneg %p692
      $region38: #{tpu_custom_call.1} parent=5 // pred_check_branch
        %695 = sbr.rel (%p693) target = $region40
      $region39: #{tpu_custom_call.1} parent=5 // pred_region
        %s696 = ssub.s32 %s12, 2
        // Predicated region
        $region41: #{tpu_custom_call.1} parent=39 // pred_check
          %p697 = pneg %p142
        $region42: #{tpu_custom_call.1} parent=39 // pred_check_branch
          %699 = sbr.rel (%p697) target = $region44
        $region43: #{tpu_custom_call.1} parent=39 // pred_region
          %s700 = sand.u32 %s127, 1
          %s701 = scalar_lea.sflag [#allocation3], %s700
          %s702 = sand.u32 %s127, 1
          %s703 = smul.addr %s702, 64
          %s704 = scalar_lea.vmem [#allocation2], %s703
          %705 = dma.done %s701, 1024
        $region44: #{tpu_custom_call.1} parent=39 // pred_fallthru
          _
      $region40: #{tpu_custom_call.1} parent=5 // pred_fallthru
        _
    $region6: #{tpu_custom_call.1} parent=1 // loop_footer
      %s16 = sadd.s32 1, %s12
    $region7: #{tpu_custom_call.1} parent=1 // loop_footer_branch
      %11 = sbr.rel target = $region3
    $region8: #{tpu_custom_call.1} parent=1 // loop_exit
      _
    %706 = vsyncpa [#allocation3], 1
    %s707 = scalar_lea.sflag [#allocation3], 1
    %708 = vsyncpa %s707, 1

</llo_original>
